<compile_context>
chip_gen: v5e
topology: v5e:2x2
jax: 0.10.0
libtpu: 0.0.40
codegen_flags: <defaults>
</compile_context>

<pallas_src>
import functools

import jax
import jax.numpy as jnp
from jax.experimental import pallas as pl
from jax.experimental.pallas import tpu as pltpu


# ----------------------------------------------------------------------------
# Small helpers
# ----------------------------------------------------------------------------
def _round_up(x, m):
    return (x + m - 1) // m * m


def _m_tiles(M, tm_max):
    """Pad M to a tileable size and pick the row-tile."""
    Mp = _round_up(M, 8)
    if Mp > tm_max:
        tm = tm_max
        Mp = _round_up(M, tm)
    else:
        tm = Mp
    return Mp, tm


def _cpad(c):
    """Channel counts carried in activations: 64 is padded to a full 128 lanes."""
    return 128 if c == 64 else c


# ----------------------------------------------------------------------------
# Pallas kernels
# ----------------------------------------------------------------------------
def _mm_kernel(relu, a_ref, b_ref, bias_ref, o_ref):
    # (tm, K)bf16 @ (K, tn)bf16 -> f32 acc ; + folded BN shift ; optional ReLU
    acc = jnp.dot(a_ref[...], b_ref[...], preferred_element_type=jnp.float32)
    acc = acc + bias_ref[...]
    if relu:
        acc = jnp.maximum(acc, 0.0)
    o_ref[...] = acc.astype(o_ref.dtype)


def _mm_res_kernel(relu, a_ref, b_ref, bias_ref, r_ref, o_ref):
    # BasicBlock tail (identity shortcut): conv2 + bn2 + residual + ReLU
    acc = jnp.dot(a_ref[...], b_ref[...], preferred_element_type=jnp.float32)
    acc = acc + bias_ref[...] + r_ref[...].astype(jnp.float32)
    if relu:
        acc = jnp.maximum(acc, 0.0)
    o_ref[...] = acc.astype(o_ref.dtype)


def _mm_dual_kernel(relu, a_ref, b_ref, bias_ref, a2_ref, b2_ref, bias2_ref, o_ref):
    # BasicBlock tail (projection shortcut): conv2+bn2 and the 1x1 strided
    # downsample conv+bn are both computed here, then added and ReLU'd.
    acc = jnp.dot(a_ref[...], b_ref[...], preferred_element_type=jnp.float32)
    acc = acc + jnp.dot(a2_ref[...], b2_ref[...],
                        preferred_element_type=jnp.float32)
    acc = acc + bias_ref[...] + bias2_ref[...]
    if relu:
        acc = jnp.maximum(acc, 0.0)
    o_ref[...] = acc.astype(o_ref.dtype)


def _max9_kernel(*refs):
    # max over the 9 (kh, kw) taps of the 3x3/s2/p1 pooling window
    o_ref = refs[-1]
    m = refs[0][...]
    for r in refs[1:-1]:
        m = jnp.maximum(m, r[...])
    o_ref[...] = m


def _head_kernel(x_ref, w_ref, b_ref, o_ref):
    # fused global-average-pool + linear head (f32 epilogue)
    feat = jnp.mean(x_ref[...].astype(jnp.float32), axis=1)          # (B, C)
    acc = jnp.dot(feat.astype(jnp.bfloat16), w_ref[...],
                  preferred_element_type=jnp.float32)
    o_ref[...] = acc + b_ref[...]


# ----------------------------------------------------------------------------
# Pallas wrappers
# ----------------------------------------------------------------------------
def matmul_fused(a, b, bias, residual=None, second=None, relu=False,
                 out_dtype=jnp.bfloat16, tm_max=256, tn_max=256):
    """out = act((a @ b) + bias [+ residual | + a2 @ b2 + bias2]).

    bf16 MXU inputs, f32 epilogue.  a: (M, K), b: (K, N), bias: (N,),
    residual: (M, N) or None, second: (a2, b2, bias2) or None (projection
    shortcut fused as a second matmul).  Tiled over (M, N); N tile is 256
    where possible (MXU width), else 128.
    """
    assert residual is None or second is None
    M, K = a.shape
    K2, N = b.shape
    assert K == K2

    Np = _round_up(N, 128)
    tn = tn_max if (Np % tn_max == 0) else 128
    Mp, tm = _m_tiles(M, tm_max)

    a = a.astype(jnp.bfloat16)
    b = b.astype(jnp.bfloat16)
    bias = bias.astype(jnp.float32)
    if Mp != M:
        a = jnp.pad(a, ((0, Mp - M), (0, 0)))
    if Np != N:
        b = jnp.pad(b, ((0, 0), (0, Np - N)))
        bias = jnp.pad(bias, (0, Np - N))
    bias2d = bias.reshape(1, Np)

    in_specs = [
        pl.BlockSpec((tm, K), lambda i, j: (i, 0)),
        pl.BlockSpec((K, tn), lambda i, j: (0, j)),
        pl.BlockSpec((1, tn), lambda i, j: (0, j)),
    ]
    args = [a, b, bias2d]

    if residual is not None:
        r = residual
        if Mp != M:
            r = jnp.pad(r, ((0, Mp - M), (0, 0)))
        if Np != r.shape[1]:
            r = jnp.pad(r, ((0, 0), (0, Np - r.shape[1])))
        in_specs.append(pl.BlockSpec((tm, tn), lambda i, j: (i, j)))
        args.append(r)
        kernel = functools.partial(_mm_res_kernel, relu)
    elif second is not None:
        a2, b2, bias_2 = second
        Kd = a2.shape[1]
        a2 = a2.astype(jnp.bfloat16)
        b2 = b2.astype(jnp.bfloat16)
        bias_2 = bias_2.astype(jnp.float32)
        if Mp != M:
            a2 = jnp.pad(a2, ((0, Mp - M), (0, 0)))
        if Np != b2.shape[1]:
            b2 = jnp.pad(b2, ((0, 0), (0, Np - b2.shape[1])))
            bias_2 = jnp.pad(bias_2, (0, Np - bias_2.shape[0]))
        bias_2 = bias_2.reshape(1, Np)
        in_specs += [
            pl.BlockSpec((tm, Kd), lambda i, j: (i, 0)),
            pl.BlockSpec((Kd, tn), lambda i, j: (0, j)),
            pl.BlockSpec((1, tn), lambda i, j: (0, j)),
        ]
        args += [a2, b2, bias_2]
        kernel = functools.partial(_mm_dual_kernel, relu)
    else:
        kernel = functools.partial(_mm_kernel, relu)

    out = pl.pallas_call(
        kernel,
        out_shape=jax.ShapeDtypeStruct((Mp, Np), out_dtype),
        grid=(Mp // tm, Np // tn),
        in_specs=in_specs,
        out_specs=pl.BlockSpec((tm, tn), lambda i, j: (i, j)),
        compiler_params=pltpu.CompilerParams(
            dimension_semantics=("parallel", "parallel")),
    )(*args)

    if Mp != M or Np != N:
        out = out[:M, :N]
    return out


def conv_layer(x, layer, stride, padding, relu=False, residual=None, second=None):
    """Conv (im2col + fused-epilogue matmul).  Weights already carry the folded
    BN scale/shift and padded channels; x is NHWC bf16 with padded channels."""
    B, H, W, C = x.shape
    kh, kw = layer["kh"], layer["kw"]
    OH = (H + 2 * padding - kh) // stride + 1
    OW = (W + 2 * padding - kw) // stride + 1

    if kh == 1 and kw == 1 and padding == 0:
        a = x[:, ::stride, ::stride, :].reshape(B * OH * OW, C)
    else:
        xp = jnp.pad(x, ((0, 0), (padding, padding), (padding, padding), (0, 0)))
        patches = [
            xp[:, i:i + stride * (OH - 1) + 1:stride,
                  j:j + stride * (OW - 1) + 1:stride, :]
            for i in range(kh) for j in range(kw)
        ]
        a = jnp.concatenate(patches, axis=-1).reshape(B * OH * OW, kh * kw * C)

    rf = None
    if residual is not None:
        rf = residual.reshape(B * OH * OW, residual.shape[-1])

    out = matmul_fused(a, layer["wm"], layer["bias"],
                       residual=rf, second=second, relu=relu)
    return out.reshape(B, OH, OW, out.shape[-1])


def maxpool_3x3_s2_p1(x):
    """3x3 / stride-2 / pad-1 max pool; 9 shifted taps folded in one kernel."""
    B, H, W, C = x.shape
    xp = jnp.pad(x, ((0, 0), (1, 1), (1, 1), (0, 0)), constant_values=-jnp.inf)
    OH = (H + 2 - 3) // 2 + 1
    OW = (W + 2 - 3) // 2 + 1
    M = B * OH * OW
    Mp, tm = _m_tiles(M, 512)

    taps = []
    for i in range(3):
        for j in range(3):
            t = xp[:, i:i + 2 * (OH - 1) + 1:2, j:j + 2 * (OW - 1) + 1:2, :]
            t = t.reshape(M, C)
            if Mp != M:
                t = jnp.pad(t, ((0, Mp - M), (0, 0)))
            taps.append(t)

    out = pl.pallas_call(
        _max9_kernel,
        out_shape=jax.ShapeDtypeStruct((Mp, C), x.dtype),
        grid=(Mp // tm,),
        in_specs=[pl.BlockSpec((tm, C), lambda i: (i, 0))] * 9,
        out_specs=pl.BlockSpec((tm, C), lambda i: (i, 0)),
        compiler_params=pltpu.CompilerParams(dimension_semantics=("parallel",)),
    )(*taps)
    return out[:M].reshape(B, OH, OW, C)


def head_gap_fc(x, fc_w, fc_b):
    """Fused global-average-pool + fc head: (B, H, W, 512) -> (B, 10) f32."""
    B, H, W, C = x.shape
    N = fc_w.shape[1]
    Np = _round_up(N, 128)
    Bp = _round_up(B, 8)

    xf = x.reshape(B, H * W, C)
    if Bp != B:
        xf = jnp.pad(xf, ((0, Bp - B), (0, 0), (0, 0)))
    w = jnp.pad(fc_w, ((0, 0), (0, Np - N))).astype(jnp.bfloat16)
    b = jnp.pad(fc_b, (0, Np - N)).astype(jnp.float32).reshape(1, Np)

    out = pl.pallas_call(
        _head_kernel,
        out_shape=jax.ShapeDtypeStruct((Bp, Np), jnp.float32),
        grid=(1,),
        in_specs=[
            pl.BlockSpec((Bp, H * W, C), lambda i: (0, 0, 0)),
            pl.BlockSpec((C, Np), lambda i: (0, 0)),
            pl.BlockSpec((1, Np), lambda i: (0, 0)),
        ],
        out_specs=pl.BlockSpec((Bp, Np), lambda i: (0, 0)),
    )(xf, w, b)
    return out[:B, :N]


# ----------------------------------------------------------------------------
# Parameter construction (deterministic, synthetic) and BN/weight folding
# ----------------------------------------------------------------------------
def make_resnet18_params(key):
    keys = iter(jax.random.split(key, 256))

    def nk():
        return next(keys)

    def conv_w(cout, cin, k):
        return jax.random.normal(nk(), (cout, cin, k, k), jnp.float32) * 0.05

    def bn(c):
        return dict(
            gamma=1.0 + 0.1 * jax.random.normal(nk(), (c,), jnp.float32),
            beta=0.1 * jax.random.normal(nk(), (c,), jnp.float32),
            mean=0.1 * jax.random.normal(nk(), (c,), jnp.float32),
            var=0.5 + jax.random.uniform(nk(), (c,), jnp.float32),
        )

    def basic_block(cin, cout, stride):
        blk = dict(
            stride=stride,
            conv1=conv_w(cout, cin, 3),
            bn1=bn(cout),
            conv2=conv_w(cout, cout, 3),
            bn2=bn(cout),
        )
        if stride != 1 or cin != cout:
            blk["down_conv"] = conv_w(cout, cin, 1)
            blk["down_bn"] = bn(cout)
        return blk

    params = dict(conv1=conv_w(64, 1, 7), bn1=bn(64))
    stages = [(64, 64, 1), (64, 128, 2), (128, 256, 2), (256, 512, 2)]
    for i, (cin, cout, s) in enumerate(stages, start=1):
        params[f"layer{i}"] = [basic_block(cin, cout, s), basic_block(cout, cout, 1)]
    # nn.Linear(512, 10): store as (in, out) so logits = feat @ W + b
    params["fc_w"] = jax.random.normal(nk(), (512, 10), jnp.float32) * 0.05
    params["fc_b"] = jax.random.normal(nk(), (10,), jnp.float32) * 0.05
    return params


def _fold_conv(w, bn, cin_pad, cout_pad, eps=1e-5):
    """Fold eval-mode BN into the conv weight/bias, pad channels, cast to bf16.

    Padded output lanes get zero weight columns and zero shift (so they stay 0
    through ReLU / residual-add / maxpool); padded input lanes get zero rows.
    """
    cout, cin, kh, kw = w.shape
    scale = bn["gamma"] / jnp.sqrt(bn["var"] + eps)          # (Cout,)
    shift = bn["beta"] - bn["mean"] * scale                  # (Cout,)
    w = w * scale[:, None, None, None]
    wm = jnp.transpose(w, (2, 3, 1, 0))                      # (KH, KW, Cin, Cout)
    wm = jnp.pad(wm, ((0, 0), (0, 0), (0, cin_pad - cin), (0, cout_pad - cout)))
    wm = wm.reshape(kh * kw * cin_pad, cout_pad).astype(jnp.bfloat16)
    bias = jnp.pad(shift, (0, cout_pad - cout)).astype(jnp.float32)
    return dict(wm=wm, bias=bias, kh=kh, kw=kw)


def prepare_resnet18(params, eps=1e-5):
    prep = dict(
        conv1=_fold_conv(params["conv1"], params["bn1"],
                         cin_pad=1, cout_pad=_cpad(64), eps=eps),
        layers=[],
        fc_w=params["fc_w"],
        fc_b=params["fc_b"],
    )
    for li in (1, 2, 3, 4):
        blocks = []
        for blk in params[f"layer{li}"]:
            cout, cin = blk["conv1"].shape[:2]
            b = dict(
                stride=blk["stride"],
                conv1=_fold_conv(blk["conv1"], blk["bn1"],
                                 cin_pad=_cpad(cin), cout_pad=_cpad(cout), eps=eps),
                conv2=_fold_conv(blk["conv2"], blk["bn2"],
                                 cin_pad=_cpad(cout), cout_pad=_cpad(cout), eps=eps),
            )
            if "down_conv" in blk:
                b["down"] = _fold_conv(blk["down_conv"], blk["down_bn"],
                                       cin_pad=_cpad(cin), cout_pad=_cpad(cout),
                                       eps=eps)
            blocks.append(b)
        prep["layers"].append(blocks)
    return prep


# ----------------------------------------------------------------------------
# Forward pass (matches torchvision resnet18 with modified conv1/fc, eval BN)
# ----------------------------------------------------------------------------
def basic_block_forward(x, blk):
    s = blk["stride"]
    out = conv_layer(x, blk["conv1"], stride=s, padding=1, relu=True)  # conv+bn+relu
    if "down" in blk:
        # Projection shortcut: fuse the 1x1 strided conv+bn into conv2's epilogue.
        xs = x[:, ::s, ::s, :]
        xs = xs.reshape(-1, xs.shape[-1])
        x = conv_layer(out, blk["conv2"], stride=1, padding=1, relu=True,
                       second=(xs, blk["down"]["wm"], blk["down"]["bias"]))
    else:
        # Identity shortcut: fused residual add in conv2's epilogue.
        x = conv_layer(out, blk["conv2"], stride=1, padding=1, relu=True,
                       residual=x)
    return x


def resnet18_forward(prep, x_nchw):
    # NCHW -> NHWC, bf16 activations (f32 accumulation inside every kernel)
    x = jnp.transpose(x_nchw.astype(jnp.float32), (0, 2, 3, 1)).astype(jnp.bfloat16)

    x = conv_layer(x, prep["conv1"], stride=2, padding=3, relu=True)   # conv1+bn1+relu
    x = maxpool_3x3_s2_p1(x)

    for blocks in prep["layers"]:
        for blk in blocks:
            x = basic_block_forward(x, blk)

    return head_gap_fc(x, prep["fc_w"], prep["fc_b"])                  # (B, 10) f32


# ----------------------------------------------------------------------------
if __name__ == "__main__":
    key = jax.random.PRNGKey(0)
    pkey, xkey = jax.random.split(key)
    raw_params = make_resnet18_params(pkey)
    prep = prepare_resnet18(raw_params)

    # Grayscale input (conv1 takes 1 channel). 32x32 keeps all stages valid:
    # 32 -> conv1/2 -> 16 -> maxpool -> 8 -> 8 -> 4 -> 2 -> 1 -> GAP -> fc(10)
    x = jax.random.normal(xkey, (2, 1, 32, 32), jnp.float32)

    logits = resnet18_forward(prep, x)
    logits = jax.block_until_ready(logits)

    assert logits.shape == (2, 10), logits.shape
    assert bool(jnp.all(jnp.isfinite(logits)))
    print("KERNEL_OK")
</pallas_src>

<mosaic_0001>
module attributes {stable_mosaic.version = 11 : i64} {
  func.func @_mm_kernel(%arg0: i32, %arg1: i32, %arg2: memref<256x49xbf16, #tpu.memory_space<vmem>>, %arg3: memref<49x128xbf16, #tpu.memory_space<vmem>>, %arg4: memref<1x128xf32, #tpu.memory_space<vmem>>, %arg5: memref<256x128xbf16, #tpu.memory_space<vmem>>) attributes {dimension_semantics = [#tpu.dimension_semantics<parallel>, #tpu.dimension_semantics<parallel>], iteration_bounds = array<i64: 2, 1>, scalar_prefetch = 0 : i64, scratch_operands = 0 : i64, tpu.core_type = #tpu.core_type<tc>, window_params = [{transform_indices = @transform_0, window_bounds = array<i64: 256, 49>}, {transform_indices = @transform_1, window_bounds = array<i64: 49, 128>}, {transform_indices = @transform_2, window_bounds = array<i64: 1, 128>}, {transform_indices = @transform_3, window_bounds = array<i64: 256, 128>}]} {
    %c0 = arith.constant 0 : index
    %c0_0 = arith.constant 0 : index
    %0 = vector.load %arg2[%c0, %c0_0] : memref<256x49xbf16, #tpu.memory_space<vmem>>, vector<256x49xbf16>
    %c0_1 = arith.constant 0 : index
    %c0_2 = arith.constant 0 : index
    %1 = vector.load %arg3[%c0_1, %c0_2] : memref<49x128xbf16, #tpu.memory_space<vmem>>, vector<49x128xbf16>
    %cst = arith.constant dense<0.000000e+00> : vector<256x128xf32>
    %2 = tpu.matmul %0, %1, %cst {dimension_numbers = #tpu.dot_dimension_numbers<[1], [0], [0], [1], [0, 0, 1, 1], [], []>} : vector<256x49xbf16>, vector<49x128xbf16>, vector<256x128xf32> -> vector<256x128xf32>
    %c0_3 = arith.constant 0 : index
    %c0_4 = arith.constant 0 : index
    %3 = vector.load %arg4[%c0_3, %c0_4] : memref<1x128xf32, #tpu.memory_space<vmem>>, vector<1x128xf32>
    %4 = vector.broadcast %3 : vector<1x128xf32> to vector<256x128xf32>
    %5 = arith.addf %2, %4 : vector<256x128xf32>
    %cst_5 = arith.constant 0.000000e+00 : f32
    %6 = vector.broadcast %cst_5 : f32 to vector<256x128xf32>
    %7 = arith.maximumf %5, %6 : vector<256x128xf32>
    %8 = arith.truncf %7 : vector<256x128xf32> to vector<256x128xbf16>
    %c0_6 = arith.constant 0 : index
    %c0_7 = arith.constant 0 : index
    %9 = vector.load %arg5[%c0_6, %c0_7] : memref<256x128xbf16, #tpu.memory_space<vmem>>, vector<256x128xbf16>
    tpu.vector_store %arg5[%c0_6, %c0_7], %8 {strides = array<i32>} : memref<256x128xbf16, #tpu.memory_space<vmem>>, vector<256x128xbf16>,
    return
  }
  func.func @transform_0(%arg0: i32, %arg1: i32) -> (i32, i32) {
    %c0_i32 = arith.constant 0 : i32
    %c0_i32_0 = arith.constant 0 : i32
    return %arg0, %c0_i32 : i32, i32
  }
  func.func @transform_1(%arg0: i32, %arg1: i32) -> (i32, i32) {
    %c0_i32 = arith.constant 0 : i32
    %c0_i32_0 = arith.constant 0 : i32
    return %c0_i32, %arg1 : i32, i32
  }
  func.func @transform_2(%arg0: i32, %arg1: i32) -> (i32, i32) {
    %c0_i32 = arith.constant 0 : i32
    %c0_i32_0 = arith.constant 0 : i32
    return %c0_i32, %arg1 : i32, i32
  }
  func.func @transform_3(%arg0: i32, %arg1: i32) -> (i32, i32) {
    %c0_i32 = arith.constant 0 : i32
    return %arg0, %arg1 : i32, i32
  }
}

</mosaic_0001>

<llo_original>
// kernel: tpu_custom_call.1
$region0: #{tpu_custom_call.1}
  #allocation0 [shape = 'u32[]', space=smem, size = 0x4, offset = 0x4, fixed_abs, tag = 'smem constant byte address 0x4 - core index']
  #allocation1 [shape = 'u32[72,128]{1,0:T(1,128)}', space=vmem, size = 0x9000, scoped, tag = 'internal scratch']
  %s0 = inlined_call_operand.vmem [shape: bf16[512,49], index: 0, kind: input, shape index: {}]
  %s1 = inlined_call_operand.vmem [shape: bf16[49,128], index: 1, kind: input, shape index: {}]
  %s2 = inlined_call_operand.vmem [shape: f32[1,128], index: 2, kind: input, shape index: {}]
  %s3 = inlined_call_operand.hbm [shape: bf16[512,128], index: 3, kind: output, shape index: {}]
  %s4 = sld [smem:[#allocation0]]
  $region45: #{tpu_custom_call.1} parent=0
    _
  %s6 = ssub.s32 1, %s4
  %s7 = scalar_select 0, %s6, %s4
  $region1: #{tpu_custom_call.1} parent=0
    #allocation2 [shape = 'u8[131072]{0}', space=vmem, size = 0x20000, scoped, tag = 'output window, operand 0']
    #allocation3 [shape = 's32[2]{0}', space=sflag, size = 0x8, scoped, tag = 'scoped memory for tpu_custom_call.1']
    %8 = vsyncpa [#allocation3], 0
    %s9 = scalar_lea.sflag [#allocation3], 1
    %10 = vsyncpa %s9, 0
    loop: start=0, step=1, limit=4
    $region2: #{tpu_custom_call.1} parent=1 // loop_pre_header
      _
    $region3: #{tpu_custom_call.1} parent=1 // loop_header
      %s12 = sphi 0, %s16
      %p13 = scmp.ge.s32.totalorder %s12, 4
      %s19 = sphi 0, %s31
      %s20 = sphi 0, %s27
      %s21 = sphi 0, %s19
      %s22 = sphi 0, %s20
      %s23 = sphi 0, %s21
      %s24 = sphi 0, %s22
      %s34 = sphi 0, %s36
      %s37 = sphi 0, %s34
      %s38 = sphi 0, %s37
      %s54 = sphi 0, %s38
      %s60 = sphi 0, %s62
      %s63 = sphi 0, %s60
      %s64 = sphi 0, %s63
      %s80 = sphi 0, %s64
      %s86 = sphi 0, %s88
      %s89 = sphi 0, %s86
      %s90 = sphi 0, %s89
      %s106 = sphi 0, %s90
      %s114 = sphi 0, %s116
      %s117 = sphi 0, %s114
      %s118 = sphi 0, %s117
      %s134 = sphi 0, %s118
    $region4: #{tpu_custom_call.1} parent=1 // loop_header_branch
      %15 = sbr.rel (%p13) target = $region8
    $region5: #{tpu_custom_call.1} parent=1 // loop_body
      %s17 = ssub.s32 %s12, 1
      %s18 = ssub.s32 %s12, 2
      %s25 = sadd.s32 1, %s20
      %p26 = scmp.ge.s32.totalorder %s25, 1
      %s27 = scalar_select %p26, 0, %s25
      %s28 = sadd.s32 1, %s19
      %s29 = scalar_select %p26, %s28, %s19
      %p30 = scmp.ge.s32.totalorder %s29, 2
      %s31 = scalar_select %p30, 0, %s29
      %s32 = ssub.s32 %s19, %s31
      %p33 = scmp.eq.s32.totalorder %s32, 0
      %s35 = sadd.s32 %s34, 1
      %s36 = scalar_select %p33, %s34, %s35
      %p39 = pneg %p33
      %p40 = scmp.eq.s32.totalorder %s12, 1
      %p41 = por %p39, %p40
      %p42 = scmp.ne.s32.totalorder %s34, %s37
      %p43 = scmp.eq.s32.totalorder %s12, 0
      %p44 = por %p42, %p43
      %p45 = scmp.ne.s32.totalorder %s34, %s37
      %p46 = scmp.eq.s32.totalorder %s17, 1
      %p47 = por %p45, %p46
      %p48 = scmp.ne.s32.totalorder %s37, %s38
      %p49 = scmp.eq.s32.totalorder %s17, 0
      %p50 = por %p48, %p49
      %p51 = scmp.ne.s32.totalorder %s37, %s38
      %p52 = scmp.eq.s32.totalorder %s18, 1
      %p53 = por %p51, %p52
      %p55 = scmp.ne.s32.totalorder %s38, %s54
      %p56 = scmp.eq.s32.totalorder %s18, 0
      %p57 = por %p55, %p56
      %s58 = ssub.s32 %s20, %s27
      %p59 = scmp.eq.s32.totalorder %s58, 0
      %s61 = sadd.s32 %s60, 1
      %s62 = scalar_select %p59, %s60, %s61
      %p65 = pneg %p59
      %p66 = scmp.eq.s32.totalorder %s12, 1
      %p67 = por %p65, %p66
      %p68 = scmp.ne.s32.totalorder %s60, %s63
      %p69 = scmp.eq.s32.totalorder %s12, 0
      %p70 = por %p68, %p69
      %p71 = scmp.ne.s32.totalorder %s60, %s63
      %p72 = scmp.eq.s32.totalorder %s17, 1
      %p73 = por %p71, %p72
      %p74 = scmp.ne.s32.totalorder %s63, %s64
      %p75 = scmp.eq.s32.totalorder %s17, 0
      %p76 = por %p74, %p75
      %p77 = scmp.ne.s32.totalorder %s63, %s64
      %p78 = scmp.eq.s32.totalorder %s18, 1
      %p79 = por %p77, %p78
      %p81 = scmp.ne.s32.totalorder %s64, %s80
      %p82 = scmp.eq.s32.totalorder %s18, 0
      %p83 = por %p81, %p82
      %s84 = ssub.s32 %s20, %s27
      %p85 = scmp.eq.s32.totalorder %s84, 0
      %s87 = sadd.s32 %s86, 1
      %s88 = scalar_select %p85, %s86, %s87
      %p91 = pneg %p85
      %p92 = scmp.eq.s32.totalorder %s12, 1
      %p93 = por %p91, %p92
      %p94 = scmp.ne.s32.totalorder %s86, %s89
      %p95 = scmp.eq.s32.totalorder %s12, 0
      %p96 = por %p94, %p95
      %p97 = scmp.ne.s32.totalorder %s86, %s89
      %p98 = scmp.eq.s32.totalorder %s17, 1
      %p99 = por %p97, %p98
      %p100 = scmp.ne.s32.totalorder %s89, %s90
      %p101 = scmp.eq.s32.totalorder %s17, 0
      %p102 = por %p100, %p101
      %p103 = scmp.ne.s32.totalorder %s89, %s90
      %p104 = scmp.eq.s32.totalorder %s18, 1
      %p105 = por %p103, %p104
      %p107 = scmp.ne.s32.totalorder %s90, %s106
      %p108 = scmp.eq.s32.totalorder %s18, 0
      %p109 = por %p107, %p108
      %s110 = ssub.s32 %s19, %s31
      %s111 = ssub.s32 %s20, %s27
      %s112 = sor.u32 %s110, %s111
      %p113 = scmp.eq.s32.totalorder %s112, 0
      %s115 = sadd.s32 %s114, 1
      %s116 = scalar_select %p113, %s114, %s115
      %p119 = pneg %p113
      %p120 = scmp.eq.s32.totalorder %s12, 1
      %p121 = por %p119, %p120
      %p122 = scmp.ne.s32.totalorder %s114, %s117
      %p123 = scmp.eq.s32.totalorder %s12, 0
      %p124 = por %p122, %p123
      %p125 = scmp.ne.s32.totalorder %s114, %s117
      %p126 = scmp.eq.s32.totalorder %s17, 1
      %p127 = por %p125, %p126
      %p128 = scmp.ne.s32.totalorder %s117, %s118
      %p129 = scmp.eq.s32.totalorder %s17, 0
      %p130 = por %p128, %p129
      %p131 = scmp.ne.s32.totalorder %s117, %s118
      %p132 = scmp.eq.s32.totalorder %s18, 1
      %p133 = por %p131, %p132
      %p135 = scmp.ne.s32.totalorder %s118, %s134
      %p136 = scmp.eq.s32.totalorder %s18, 0
      %p137 = por %p135, %p136
      %p138 = scmp.le.s32.totalorder 1, %s12
      %p139 = scmp.lt.s32.totalorder %s12, 3
      %p140 = pnand %p138, %p139
      %p141 = pneg %p140
      // Predicated region
      $region9: #{tpu_custom_call.1} parent=5 // pred_check
        _
      $region10: #{tpu_custom_call.1} parent=5 // pred_check_branch
        %143 = sbr.rel (%p140) target = $region12
      $region11: #{tpu_custom_call.1} parent=5 // pred_region
        %s144 = ssub.s32 %s12, 1
        // Predicated region
        $region13: #{tpu_custom_call.1} parent=11 // pred_check
          %p145 = pneg %p76
        $region14: #{tpu_custom_call.1} parent=11 // pred_check_branch
          %147 = sbr.rel (%p145) target = $region16
        $region15: #{tpu_custom_call.1} parent=11 // pred_region
          %p148 = scmp.lt.s32.totalorder %s22, 0
          %s149 = scalar_select %p148, %s22, 0
          %s150 = smul.addr %s149, 4
          %s151 = scalar_lea.vmem %s1, %s150
        $region16: #{tpu_custom_call.1} parent=11 // pred_fallthru
          _
        // Predicated region
        $region17: #{tpu_custom_call.1} parent=11 // pred_check
          %p152 = pneg %p102
        $region18: #{tpu_custom_call.1} parent=11 // pred_check_branch
          %154 = sbr.rel (%p152) target = $region20
        $region19: #{tpu_custom_call.1} parent=11 // pred_region
          %p155 = scmp.lt.s32.totalorder %s22, 0
          %s156 = scalar_select %p155, %s22, 0
          %s157 = scalar_lea.vmem %s2, %s156
        $region20: #{tpu_custom_call.1} parent=11 // pred_fallthru
          _
      $region12: #{tpu_custom_call.1} parent=5 // pred_fallthru
        _
      %p158 = scmp.lt.s32.totalorder %s12, 2
      // Predicated region
      $region21: #{tpu_custom_call.1} parent=5 // pred_check
        %p159 = pneg %p158
      $region22: #{tpu_custom_call.1} parent=5 // pred_check_branch
        %161 = sbr.rel (%p159) target = $region24
      $region23: #{tpu_custom_call.1} parent=5 // pred_region
        // Predicated region
        $region25: #{tpu_custom_call.1} parent=23 // pred_check
          %p162 = pneg %p44
        $region26: #{tpu_custom_call.1} parent=23 // pred_check_branch
          %164 = sbr.rel (%p162) target = $region28
        $region27: #{tpu_custom_call.1} parent=23 // pred_region
          %s165 = smul.u32 32, %s19
          %p166 = scmp.lt.s32.totalorder %s165, 63
          %s167 = scalar_select %p166, %s165, 63
          %s168 = smul.addr %s167, 4
          %s169 = scalar_lea.vmem %s0, %s168
          %s170 = smul.u32 32, %s19
        $region28: #{tpu_custom_call.1} parent=23 // pred_fallthru
          _
      $region24: #{tpu_custom_call.1} parent=5 // pred_fallthru
        _
      %p171 = scmp.le.s32.totalorder 1, %s12
      %p172 = scmp.lt.s32.totalorder %s12, 3
      %p173 = pnand %p171, %p172
      %p174 = pneg %p173
      // Predicated region
      $region29: #{tpu_custom_call.1} parent=5 // pred_check
        _
      $region30: #{tpu_custom_call.1} parent=5 // pred_check_branch
        %176 = sbr.rel (%p173) target = $region32
      $region31: #{tpu_custom_call.1} parent=5 // pred_region
        %s177 = ssub.s32 %s12, 1
        %s178 = smul.u32 32, %s21
        %p179 = scmp.lt.s32.totalorder %s178, 63
        %s180 = scalar_select %p179, %s178, 63
        %s181 = smul.addr %s180, 4
        %s182 = scalar_lea.vmem %s0, %s181
        %p183 = pneg %p50
        %p184 = pneg %p47
        %p185 = scmp.lt.s32.totalorder %s22, 0
        %s186 = scalar_select %p185, %s22, 0
        %s187 = smul.addr %s186, 4
        %s188 = scalar_lea.vmem %s1, %s187
        %p189 = pneg %p76
        %p190 = pneg %p73
        %p191 = scmp.lt.s32.totalorder %s22, 0
        %s192 = scalar_select %p191, %s22, 0
        %s193 = scalar_lea.vmem %s2, %s192
        %p194 = pneg %p102
        %p195 = pneg %p99
        %p196 = pneg %p130
        %p197 = pneg %p127
        %s198 = sand.u32 %s117, 1
        %s199 = scalar_lea.sflag [#allocation3], %s198
        %s200 = sand.u32 %s117, 1
        %s201 = smul.addr %s200, 128
        %s202 = scalar_lea.vmem [#allocation2], %s201
        %s203 = smul.u32 32, %s21
        %p204 = scmp.lt.s32.totalorder %s203, 63
        %s205 = scalar_select %p204, %s203, 63
        %s206 = smul.addr %s205, 4
        %s207 = scalar_lea.vmem %s0, %s206
        %s208 = smul.u32 32, %s21
        %p209 = scmp.lt.s32.totalorder %s22, 0
        %s210 = scalar_select %p209, %s22, 0
        %s211 = smul.addr %s210, 4
        %s212 = scalar_lea.vmem %s1, %s211
        %p213 = scmp.lt.s32.totalorder %s22, 0
        %s214 = scalar_select %p213, %s22, 0
        %s215 = scalar_lea.vmem %s2, %s214
        %s216 = smul.u32 32, %s21
        %v218 = vld [vmem:[%s207] sm:$0xf]
        %v219 = vld [vmem:[%s207 + $0x4] sm:$0xf]
        %v220 = vld [vmem:[%s207 + $0x8] sm:$0xf]
        %v221 = vld [vmem:[%s207 + $0xc] sm:$0xf]
        %v222 = vld [vmem:[%s207 + $0x10] sm:$0xf]
        %v223 = vld [vmem:[%s207 + $0x14] sm:$0xf]
        %v224 = vld [vmem:[%s207 + $0x18] sm:$0xf]
        %v225 = vld [vmem:[%s207 + $0x1c] sm:$0xf]
        %v226 = vld [vmem:[%s207 + $0x20] sm:$0xf]
        %v227 = vld [vmem:[%s207 + $0x24] sm:$0xf]
        %v228 = vld [vmem:[%s207 + $0x28] sm:$0xf]
        %v229 = vld [vmem:[%s207 + $0x2c] sm:$0xf]
        %v230 = vld [vmem:[%s207 + $0x30] sm:$0xf]
        %v231 = vld [vmem:[%s207 + $0x34] sm:$0xf]
        %v232 = vld [vmem:[%s207 + $0x38] sm:$0xf]
        %v233 = vld [vmem:[%s207 + $0x3c] sm:$0xf]
        %v234 = vld [vmem:[%s207 + $0x40] sm:$0xf]
        %v235 = vld [vmem:[%s207 + $0x44] sm:$0xf]
        %v236 = vld [vmem:[%s207 + $0x48] sm:$0xf]
        %v237 = vld [vmem:[%s207 + $0x4c] sm:$0xf]
        %v238 = vld [vmem:[%s207 + $0x50] sm:$0xf]
        %v239 = vld [vmem:[%s207 + $0x54] sm:$0xf]
        %v240 = vld [vmem:[%s207 + $0x58] sm:$0xf]
        %v241 = vld [vmem:[%s207 + $0x5c] sm:$0xf]
        %v242 = vld [vmem:[%s207 + $0x60] sm:$0xf]
        %v243 = vld [vmem:[%s207 + $0x64] sm:$0xf]
        %v244 = vld [vmem:[%s207 + $0x68] sm:$0xf]
        %v245 = vld [vmem:[%s207 + $0x6c] sm:$0xf]
        %v246 = vld [vmem:[%s207 + $0x70] sm:$0xf]
        %v247 = vld [vmem:[%s207 + $0x74] sm:$0xf]
        %v248 = vld [vmem:[%s207 + $0x78] sm:$0xf]
        %v249 = vld [vmem:[%s207 + $0x7c] sm:$0xf]
        %v250 = vld [vmem:[%s212] sm:$0xf]
        %v251 = vld [vmem:[%s212 + $0x4] sm:$0xf]
        %v252 = vld [vmem:[%s212 + $0x8] sm:$0xf]
        %v253 = vld [vmem:[%s212 + $0xc] sm:$0xf]
        %v254 = vld [vmem:[%s212 + $0x10] sm:$0xf]
        %v255 = vld [vmem:[%s212 + $0x14] sm:$0xf]
        %v256 = vld [vmem:[%s212 + $0x18] sm:$0x1]
        %v257 = vld [vmem:[%s215] sm:$0x1]
        %v259 = vperm.slane %v257, 0
        %v293 = vunpack.c.l.b16 %v218
        %v294 = vunpack.c.l.b16 %v219
        %v295 = vunpack.c.l.b16 %v220
        %v296 = vunpack.c.l.b16 %v221
        %v297 = vunpack.c.l.b16 %v222
        %v298 = vunpack.c.l.b16 %v223
        %v299 = vunpack.c.l.b16 %v224
        %v300 = vunpack.c.l.b16 %v225
        %v301 = vunpack.c.l.b16 %v226
        %v302 = vunpack.c.l.b16 %v227
        %v303 = vunpack.c.l.b16 %v228
        %v304 = vunpack.c.l.b16 %v229
        %v305 = vunpack.c.l.b16 %v230
        %v306 = vunpack.c.l.b16 %v231
        %v307 = vunpack.c.l.b16 %v232
        %v308 = vunpack.c.l.b16 %v233
        %v309 = vunpack.c.l.b16 %v234
        %v310 = vunpack.c.l.b16 %v235
        %v311 = vunpack.c.l.b16 %v236
        %v312 = vunpack.c.l.b16 %v237
        %v313 = vunpack.c.l.b16 %v238
        %v314 = vunpack.c.l.b16 %v239
        %v315 = vunpack.c.l.b16 %v240
        %v316 = vunpack.c.l.b16 %v241
        %v317 = vunpack.c.l.b16 %v242
        %v318 = vunpack.c.l.b16 %v243
        %v319 = vunpack.c.l.b16 %v244
        %v320 = vunpack.c.l.b16 %v245
        %v321 = vunpack.c.l.b16 %v246
        %v322 = vunpack.c.l.b16 %v247
        %v323 = vunpack.c.l.b16 %v248
        %v324 = vunpack.c.l.b16 %v249
        %v325 = vpack.c.b16 %v294, %v293
        %v326 = vpack.c.b16 %v296, %v295
        %v327 = vpack.c.b16 %v298, %v297
        %v328 = vpack.c.b16 %v300, %v299
        %v329 = vpack.c.b16 %v302, %v301
        %v330 = vpack.c.b16 %v304, %v303
        %v331 = vpack.c.b16 %v306, %v305
        %v332 = vpack.c.b16 %v308, %v307
        %v333 = vpack.c.b16 %v310, %v309
        %v334 = vpack.c.b16 %v312, %v311
        %v335 = vpack.c.b16 %v314, %v313
        %v336 = vpack.c.b16 %v316, %v315
        %v337 = vpack.c.b16 %v318, %v317
        %v338 = vpack.c.b16 %v320, %v319
        %v339 = vpack.c.b16 %v322, %v321
        %v340 = vpack.c.b16 %v324, %v323
        %v348 = vunpack.c.l.b16 %v250
        %v349 = vunpack.c.l.b16 %v251
        %v350 = vunpack.c.l.b16 %v252
        %v351 = vunpack.c.l.b16 %v253
        %v352 = vunpack.c.l.b16 %v254
        %v353 = vunpack.c.l.b16 %v255
        %v354 = vunpack.c.l.b16 %v256
        %v355 = vpack.c.b16 %v349, %v348
        %v356 = vpack.c.b16 %v351, %v350
        %v357 = vpack.c.b16 %v353, %v352
        %v358 = vpack.c.b16 %v354, %v354
        %vm362 = vcmask 400384
        %v364 = vsel %vm362, %v325, 0
        %v367 = vsel %vm362, %v326, 0
        %v370 = vsel %vm362, %v327, 0
        %v373 = vsel %vm362, %v328, 0
        %v376 = vsel %vm362, %v329, 0
        %v379 = vsel %vm362, %v330, 0
        %v382 = vsel %vm362, %v331, 0
        %v385 = vsel %vm362, %v332, 0
        %v388 = vsel %vm362, %v333, 0
        %v391 = vsel %vm362, %v334, 0
        %v394 = vsel %vm362, %v335, 0
        %v397 = vsel %vm362, %v336, 0
        %v400 = vsel %vm362, %v337, 0
        %v403 = vsel %vm362, %v338, 0
        %v406 = vsel %vm362, %v339, 0
        %v409 = vsel %vm362, %v340, 0
        %vm411 = vcmask 1040384
        %v412 = vsel 0, 4294967295, 65535
        %v413 = vsel %vm411, %v412, 0
        %v415 = vand.u32 %v358, %v413
        %417 = vmatpush.bf16.msra.mxu0 0
        %418 = vmatpush.bf16.msra.mxu0 0
        %419 = vmatpush.bf16.msra.mxu0 0
        %420 = vmatpush.bf16.msra.mxu0 0
        %421 = vmatpush.bf16.msra.mxu0 %v415
        %422 = vmatpush.bf16.msra.mxu0 %v357
        %423 = vmatpush.bf16.msra.mxu0 %v356
        %424 = vmatpush.bf16.msra.mxu0 %v355
        %425 = vmatmul.bf16.gmra.mxu0 %v364
        %v426 = vpop.f32.mrf.mxu0
        %v427 = vadd.f32 %v259, %v426
        %v428 = vpop.f32.mrf.mxu0
        %v429 = vadd.f32 %v259, %v428
        %430 = vmatmul.bf16.gmra.mxu0 %v367
        %v431 = vpop.f32.mrf.mxu0
        %v432 = vadd.f32 %v259, %v431
        %v433 = vpop.f32.mrf.mxu0
        %v434 = vadd.f32 %v259, %v433
        %435 = vmatmul.bf16.gmra.mxu0 %v370
        %v436 = vpop.f32.mrf.mxu0
        %v437 = vadd.f32 %v259, %v436
        %v438 = vpop.f32.mrf.mxu0
        %v439 = vadd.f32 %v259, %v438
        %440 = vmatmul.bf16.gmra.mxu0 %v373
        %v441 = vpop.f32.mrf.mxu0
        %v442 = vadd.f32 %v259, %v441
        %v443 = vpop.f32.mrf.mxu0
        %v444 = vadd.f32 %v259, %v443
        %445 = vmatmul.bf16.gmra.mxu0 %v376
        %v446 = vpop.f32.mrf.mxu0
        %v447 = vadd.f32 %v259, %v446
        %v448 = vpop.f32.mrf.mxu0
        %v449 = vadd.f32 %v259, %v448
        %450 = vmatmul.bf16.gmra.mxu0 %v379
        %v451 = vpop.f32.mrf.mxu0
        %v452 = vadd.f32 %v259, %v451
        %v453 = vpop.f32.mrf.mxu0
        %v454 = vadd.f32 %v259, %v453
        %455 = vmatmul.bf16.gmra.mxu0 %v382
        %v456 = vpop.f32.mrf.mxu0
        %v457 = vadd.f32 %v259, %v456
        %v458 = vpop.f32.mrf.mxu0
        %v459 = vadd.f32 %v259, %v458
        %460 = vmatmul.bf16.gmra.mxu0 %v385
        %v461 = vpop.f32.mrf.mxu0
        %v462 = vadd.f32 %v259, %v461
        %v463 = vpop.f32.mrf.mxu0
        %v464 = vadd.f32 %v259, %v463
        %465 = vmatmul.bf16.gmra.mxu0 %v388
        %v466 = vpop.f32.mrf.mxu0
        %v467 = vadd.f32 %v259, %v466
        %v468 = vpop.f32.mrf.mxu0
        %v469 = vadd.f32 %v259, %v468
        %470 = vmatmul.bf16.gmra.mxu0 %v391
        %v471 = vpop.f32.mrf.mxu0
        %v472 = vadd.f32 %v259, %v471
        %v473 = vpop.f32.mrf.mxu0
        %v474 = vadd.f32 %v259, %v473
        %475 = vmatmul.bf16.gmra.mxu0 %v394
        %v476 = vpop.f32.mrf.mxu0
        %v477 = vadd.f32 %v259, %v476
        %v478 = vpop.f32.mrf.mxu0
        %v479 = vadd.f32 %v259, %v478
        %480 = vmatmul.bf16.gmra.mxu0 %v397
        %v481 = vpop.f32.mrf.mxu0
        %v482 = vadd.f32 %v259, %v481
        %v483 = vpop.f32.mrf.mxu0
        %v484 = vadd.f32 %v259, %v483
        %485 = vmatmul.bf16.gmra.mxu0 %v400
        %v486 = vpop.f32.mrf.mxu0
        %v487 = vadd.f32 %v259, %v486
        %v488 = vpop.f32.mrf.mxu0
        %v489 = vadd.f32 %v259, %v488
        %490 = vmatmul.bf16.gmra.mxu0 %v403
        %v491 = vpop.f32.mrf.mxu0
        %v492 = vadd.f32 %v259, %v491
        %v493 = vpop.f32.mrf.mxu0
        %v494 = vadd.f32 %v259, %v493
        %495 = vmatmul.bf16.gmra.mxu0 %v406
        %v496 = vpop.f32.mrf.mxu0
        %v497 = vadd.f32 %v259, %v496
        %v498 = vpop.f32.mrf.mxu0
        %v499 = vadd.f32 %v259, %v498
        %500 = vmatmul.bf16.gmra.mxu0 %v409
        %v501 = vpop.f32.mrf.mxu0
        %v502 = vadd.f32 %v259, %v501
        %v503 = vpop.f32.mrf.mxu0
        %v504 = vadd.f32 %v259, %v503
        %505 = vdwg.mxu0
        %v506 = vmax.f32 %v427, 0.0
        %v507 = vmax.f32 %v429, 0.0
        %v508 = vmax.f32 %v432, 0.0
        %v509 = vmax.f32 %v434, 0.0
        %v510 = vmax.f32 %v437, 0.0
        %v511 = vmax.f32 %v439, 0.0
        %v512 = vmax.f32 %v442, 0.0
        %v513 = vmax.f32 %v444, 0.0
        %v514 = vmax.f32 %v447, 0.0
        %v515 = vmax.f32 %v449, 0.0
        %v516 = vmax.f32 %v452, 0.0
        %v517 = vmax.f32 %v454, 0.0
        %v518 = vmax.f32 %v457, 0.0
        %v519 = vmax.f32 %v459, 0.0
        %v520 = vmax.f32 %v462, 0.0
        %v521 = vmax.f32 %v464, 0.0
        %v522 = vmax.f32 %v467, 0.0
        %v523 = vmax.f32 %v469, 0.0
        %v524 = vmax.f32 %v472, 0.0
        %v525 = vmax.f32 %v474, 0.0
        %v526 = vmax.f32 %v477, 0.0
        %v527 = vmax.f32 %v479, 0.0
        %v528 = vmax.f32 %v482, 0.0
        %v529 = vmax.f32 %v484, 0.0
        %v530 = vmax.f32 %v487, 0.0
        %v531 = vmax.f32 %v489, 0.0
        %v532 = vmax.f32 %v492, 0.0
        %v533 = vmax.f32 %v494, 0.0
        %v534 = vmax.f32 %v497, 0.0
        %v535 = vmax.f32 %v499, 0.0
        %v536 = vmax.f32 %v502, 0.0
        %v537 = vmax.f32 %v504, 0.0
        %v538 = vpack.c.bf16 %v506, %v506
        %v539 = vpack.c.bf16 %v507, %v507
        %v540 = vpack.c.bf16 %v508, %v508
        %v541 = vpack.c.bf16 %v509, %v509
        %v542 = vpack.c.bf16 %v510, %v510
        %v543 = vpack.c.bf16 %v511, %v511
        %v544 = vpack.c.bf16 %v512, %v512
        %v545 = vpack.c.bf16 %v513, %v513
        %v546 = vpack.c.bf16 %v514, %v514
        %v547 = vpack.c.bf16 %v515, %v515
        %v548 = vpack.c.bf16 %v516, %v516
        %v549 = vpack.c.bf16 %v517, %v517
        %v550 = vpack.c.bf16 %v518, %v518
        %v551 = vpack.c.bf16 %v519, %v519
        %v552 = vpack.c.bf16 %v520, %v520
        %v553 = vpack.c.bf16 %v521, %v521
        %v554 = vpack.c.bf16 %v522, %v522
        %v555 = vpack.c.bf16 %v523, %v523
        %v556 = vpack.c.bf16 %v524, %v524
        %v557 = vpack.c.bf16 %v525, %v525
        %v558 = vpack.c.bf16 %v526, %v526
        %v559 = vpack.c.bf16 %v527, %v527
        %v560 = vpack.c.bf16 %v528, %v528
        %v561 = vpack.c.bf16 %v529, %v529
        %v562 = vpack.c.bf16 %v530, %v530
        %v563 = vpack.c.bf16 %v531, %v531
        %v564 = vpack.c.bf16 %v532, %v532
        %v565 = vpack.c.bf16 %v533, %v533
        %v566 = vpack.c.bf16 %v534, %v534
        %v567 = vpack.c.bf16 %v535, %v535
        %v568 = vpack.c.bf16 %v536, %v536
        %v569 = vpack.c.bf16 %v537, %v537
        %570 = vst [vmem:[%s202] sm:$0xf] %v538
        %571 = vst [vmem:[%s202 + $0x4] sm:$0xf] %v539
        %572 = vst [vmem:[%s202 + $0x8] sm:$0xf] %v540
        %573 = vst [vmem:[%s202 + $0xc] sm:$0xf] %v541
        %574 = vst [vmem:[%s202 + $0x10] sm:$0xf] %v542
        %575 = vst [vmem:[%s202 + $0x14] sm:$0xf] %v543
        %576 = vst [vmem:[%s202 + $0x18] sm:$0xf] %v544
        %577 = vst [vmem:[%s202 + $0x1c] sm:$0xf] %v545
        %578 = vst [vmem:[%s202 + $0x20] sm:$0xf] %v546
        %579 = vst [vmem:[%s202 + $0x24] sm:$0xf] %v547
        %580 = vst [vmem:[%s202 + $0x28] sm:$0xf] %v548
        %581 = vst [vmem:[%s202 + $0x2c] sm:$0xf] %v549
        %582 = vst [vmem:[%s202 + $0x30] sm:$0xf] %v550
        %583 = vst [vmem:[%s202 + $0x34] sm:$0xf] %v551
        %584 = vst [vmem:[%s202 + $0x38] sm:$0xf] %v552
        %585 = vst [vmem:[%s202 + $0x3c] sm:$0xf] %v553
        %586 = vst [vmem:[%s202 + $0x40] sm:$0xf] %v554
        %587 = vst [vmem:[%s202 + $0x44] sm:$0xf] %v555
        %588 = vst [vmem:[%s202 + $0x48] sm:$0xf] %v556
        %589 = vst [vmem:[%s202 + $0x4c] sm:$0xf] %v557
        %590 = vst [vmem:[%s202 + $0x50] sm:$0xf] %v558
        %591 = vst [vmem:[%s202 + $0x54] sm:$0xf] %v559
        %592 = vst [vmem:[%s202 + $0x58] sm:$0xf] %v560
        %593 = vst [vmem:[%s202 + $0x5c] sm:$0xf] %v561
        %594 = vst [vmem:[%s202 + $0x60] sm:$0xf] %v562
        %595 = vst [vmem:[%s202 + $0x64] sm:$0xf] %v563
        %596 = vst [vmem:[%s202 + $0x68] sm:$0xf] %v564
        %597 = vst [vmem:[%s202 + $0x6c] sm:$0xf] %v565
        %598 = vst [vmem:[%s202 + $0x70] sm:$0xf] %v566
        %599 = vst [vmem:[%s202 + $0x74] sm:$0xf] %v567
        %600 = vst [vmem:[%s202 + $0x78] sm:$0xf] %v568
        %601 = vst [vmem:[%s202 + $0x7c] sm:$0xf] %v569
        %s602 = sand.u32 %s117, 1
        %s603 = scalar_lea.sflag [#allocation3], %s602
        %s604 = sand.u32 %s117, 1
        %s605 = smul.addr %s604, 128
        %s606 = scalar_lea.vmem [#allocation2], %s605
        // Predicated region
        $region33: #{tpu_custom_call.1} parent=31 // pred_check
          %p607 = pneg %p127
        $region34: #{tpu_custom_call.1} parent=31 // pred_check_branch
          %609 = sbr.rel (%p607) target = $region36
        $region35: #{tpu_custom_call.1} parent=31 // pred_region
          %s610 = smul.u32 32, %s21
          %612 = vsyncadd %s603, 0
          %s613 = sadd.s32 %s22, %s610
          %s614 = smul.addr %s613, 4
          %s615 = scalar_lea.hbm %s3, %s614
          %s616 = sshll.u32 %s606, 4
          %s617 = int_to_ptr.vmem [resolvable:$true] %s616
          %s618 = sshll.u32 %s615, 4
          %s619 = int_to_ptr.hbm [resolvable:$true] %s618
          %624 = dma.vmem_to_hbm [thread:$0]  %s617, 2048, %s619, %s603, 64, 64, 4
        $region36: #{tpu_custom_call.1} parent=31 // pred_fallthru
          _
      $region32: #{tpu_custom_call.1} parent=5 // pred_fallthru
        _
      %p625 = scmp.le.s32.totalorder 2, %s12
      // Predicated region
      $region37: #{tpu_custom_call.1} parent=5 // pred_check
        %p626 = pneg %p625
      $region38: #{tpu_custom_call.1} parent=5 // pred_check_branch
        %628 = sbr.rel (%p626) target = $region40
      $region39: #{tpu_custom_call.1} parent=5 // pred_region
        %s629 = ssub.s32 %s12, 2
        // Predicated region
        $region41: #{tpu_custom_call.1} parent=39 // pred_check
          %p630 = pneg %p133
        $region42: #{tpu_custom_call.1} parent=39 // pred_check_branch
          %632 = sbr.rel (%p630) target = $region44
        $region43: #{tpu_custom_call.1} parent=39 // pred_region
          %s633 = sand.u32 %s118, 1
          %s634 = scalar_lea.sflag [#allocation3], %s633
          %s635 = sand.u32 %s118, 1
          %s636 = smul.addr %s635, 128
          %s637 = scalar_lea.vmem [#allocation2], %s636
          %639 = dma.done %s634, 2048
        $region44: #{tpu_custom_call.1} parent=39 // pred_fallthru
          _
      $region40: #{tpu_custom_call.1} parent=5 // pred_fallthru
        _
    $region6: #{tpu_custom_call.1} parent=1 // loop_footer
      %s16 = sadd.s32 1, %s12
    $region7: #{tpu_custom_call.1} parent=1 // loop_footer_branch
      %11 = sbr.rel target = $region3
    $region8: #{tpu_custom_call.1} parent=1 // loop_exit
      _
    %640 = vsyncpa [#allocation3], 1
    %s641 = scalar_lea.sflag [#allocation3], 1
    %642 = vsyncpa %s641, 1

</llo_original>
